<compile_context>
chip_gen: v5e
topology: v5e:2x2
jax: 0.10.0
libtpu: 0.0.40
codegen_flags: <defaults>
</compile_context>

<pallas_src>
import functools
import math

import jax
import jax.numpy as jnp
from jax.experimental import pallas as pl
from jax.experimental.pallas import tpu as pltpu

_MASK_VALUE = -1e30  # finite "minus infinity" for masked scores (exp -> 0)


def _pick_tile(dim: int, target: int) -> int:
    """Largest tile <= target that evenly divides dim (multiple of 8 if < dim)."""
    if dim <= target:
        return dim
    for t in range(target, 0, -1):
        if dim % t == 0 and t % 8 == 0:
            return t
    return dim


def _attention_out_kernel(q_ref, k_ref, v_ref, w_ref, b_ref, out_ref,
                          m_sc, l_sc, acc_sc, oacc_sc,
                          *, scale, q_tile, kv_tile, use_local_attn, window_size):
    # grid = (batch, q_tiles, heads, kv_tiles); heads/kv are reduction axes.
    qi = pl.program_id(1)
    h = pl.program_id(2)
    ki = pl.program_id(3)
    n_heads = pl.num_programs(2)
    n_kv = pl.num_programs(3)

    # Fresh d_model output accumulator at the start of each (batch, q_tile).
    @pl.when(jnp.logical_and(h == 0, ki == 0))
    def _():
        oacc_sc[...] = jnp.zeros_like(oacc_sc)

    # Fresh online-softmax state at the start of each head's kv loop.
    @pl.when(ki == 0)
    def _():
        m_sc[...] = jnp.full_like(m_sc, -jnp.inf)
        l_sc[...] = jnp.zeros_like(l_sc)
        acc_sc[...] = jnp.zeros_like(acc_sc)

    # Skip kv blocks that lie entirely in the causal future of this q block.
    @pl.when(ki * kv_tile <= qi * q_tile + (q_tile - 1))
    def _():
        q = q_ref[...].astype(jnp.float32)          # (tq, d_head)
        k = k_ref[...].astype(jnp.float32)          # (tk, d_head)
        # scores: (tq, tk), contraction over d_head.
        s = jax.lax.dot_general(
            q, k, (((1,), (1,)), ((), ())),
            preferred_element_type=jnp.float32) * scale

        q_idx = qi * q_tile + jax.lax.broadcasted_iota(
            jnp.int32, (q_tile, kv_tile), 0)
        k_idx = ki * kv_tile + jax.lax.broadcasted_iota(
            jnp.int32, (q_tile, kv_tile), 1)
        mask = q_idx >= k_idx
        if use_local_attn:
            mask = jnp.logical_and(mask, (q_idx - k_idx) < window_size)
        s = jnp.where(mask, s, _MASK_VALUE)

        m_prev = m_sc[...]
        m_new = jnp.maximum(m_prev, s.max(axis=-1, keepdims=True))
        alpha = jnp.exp(m_prev - m_new)
        p = jnp.exp(s - m_new)
        l_sc[...] = alpha * l_sc[...] + p.sum(axis=-1, keepdims=True)
        acc_sc[...] = alpha * acc_sc[...] + jnp.dot(
            p, v_ref[...].astype(jnp.float32), preferred_element_type=jnp.float32)
        m_sc[...] = m_new

    # After the last kv block of this head: normalize and fold this head's
    # contribution into the d_model accumulator (z never touches HBM).
    @pl.when(ki == n_kv - 1)
    def _():
        z = acc_sc[...] / l_sc[...]                 # (tq, d_head) f32
        oacc_sc[...] += jnp.dot(z, w_ref[...].astype(jnp.float32),
                                preferred_element_type=jnp.float32)

    # After the last head: add bias and write this output tile once.
    @pl.when(jnp.logical_and(h == n_heads - 1, ki == n_kv - 1))
    def _():
        out_ref[...] = (oacc_sc[...] + b_ref[...].astype(jnp.float32)
                        ).astype(out_ref.dtype)


def attention_out(q, k, v, residual, W_O, b_O, *, n_heads,
                  use_attn_scale=True, use_local_attn=False, window_size=256,
                  q_tile=128, kv_tile=128):
    """Pallas implementation of AttentionOut.forward.

    q, k, v:  [..., pos, n_heads * d_head]
    residual: [..., pos, d_model]  (identity pass-through, never copied)
    W_O:      [n_heads, d_head, d_model],  b_O: [d_model]
    Returns (out, residual).
    """
    *lead, seq, hd = q.shape
    assert hd % n_heads == 0
    d_head = hd // n_heads
    n_h_w, d_head_w, d_model = W_O.shape
    assert n_h_w == n_heads and d_head_w == d_head

    batch = math.prod(lead) if lead else 1

    # [B, H, S, D]: heads on a grid axis, d_head on the lane axis.
    def split_heads(x):
        return jnp.transpose(x.reshape(batch, seq, n_heads, d_head), (0, 2, 1, 3))

    q4, k4, v4 = split_heads(q), split_heads(k), split_heads(v)
    b2 = b_O.reshape(1, d_model)

    tq = _pick_tile(seq, q_tile)
    tk = _pick_tile(seq, kv_tile)
    n_q, n_kv = seq // tq, seq // tk

    scale = (1.0 / math.sqrt(d_head)) if use_attn_scale else 1.0
    out_dtype = jnp.result_type(v.dtype, W_O.dtype)

    kernel = functools.partial(
        _attention_out_kernel, scale=scale, q_tile=tq, kv_tile=tk,
        use_local_attn=use_local_attn, window_size=window_size)

    flops = (4 * batch * n_heads * seq * seq * d_head
             + 2 * batch * seq * n_heads * d_head * d_model)
    bytes_accessed = ((q4.size + k4.size + v4.size) * q4.dtype.itemsize
                      + W_O.size * W_O.dtype.itemsize
                      + b_O.size * b_O.dtype.itemsize
                      + batch * seq * d_model * jnp.dtype(out_dtype).itemsize)
    cost = pl.CostEstimate(flops=int(flops),
                           transcendentals=int(batch * n_heads * seq * seq),
                           bytes_accessed=int(bytes_accessed))

    out = pl.pallas_call(
        kernel,
        out_shape=jax.ShapeDtypeStruct((batch, seq, d_model), out_dtype),
        grid_spec=pltpu.PrefetchScalarGridSpec(
            num_scalar_prefetch=0,
            grid=(batch, n_q, n_heads, n_kv),
            in_specs=[
                pl.BlockSpec((None, None, tq, d_head),
                             lambda b, qi, h, ki: (b, h, qi, 0)),   # q
                pl.BlockSpec((None, None, tk, d_head),
                             lambda b, qi, h, ki: (b, h, ki, 0)),   # k
                pl.BlockSpec((None, None, tk, d_head),
                             lambda b, qi, h, ki: (b, h, ki, 0)),   # v
                pl.BlockSpec((None, d_head, d_model),
                             lambda b, qi, h, ki: (h, 0, 0)),       # W_O (per head)
                pl.BlockSpec((1, d_model),
                             lambda b, qi, h, ki: (0, 0)),          # b_O
            ],
            out_specs=pl.BlockSpec((None, tq, d_model),
                                   lambda b, qi, h, ki: (b, qi, 0)),
            scratch_shapes=[
                pltpu.VMEM((tq, 1), jnp.float32),        # m (running max)
                pltpu.VMEM((tq, 1), jnp.float32),        # l (running denom)
                pltpu.VMEM((tq, d_head), jnp.float32),   # per-head acc
                pltpu.VMEM((tq, d_model), jnp.float32),  # output acc over heads
            ],
        ),
        compiler_params=pltpu.CompilerParams(
            dimension_semantics=("parallel", "parallel", "arbitrary", "arbitrary")),
        cost_estimate=cost,
    )(q4, k4, v4, W_O, b2)

    out = out.reshape(*lead, seq, d_model)
    # Residual is an identity pass-through: return the caller's array directly
    # (no HBM read or write is spent on it).
    return out, residual


def _reference_attention_out(q, k, v, residual, W_O, b_O, *, n_heads,
                             use_attn_scale=True):
    """Plain-JAX reference matching the PyTorch forward."""
    *lead, seq, hd = q.shape
    d_head = hd // n_heads
    qh = q.reshape(*lead, seq, n_heads, d_head)
    kh = k.reshape(*lead, seq, n_heads, d_head)
    vh = v.reshape(*lead, seq, n_heads, d_head)
    attn_scale = math.sqrt(d_head) if use_attn_scale else 1.0
    scores = jnp.einsum("...qhd,...khd->...hqk", qh, kh) / attn_scale
    mask = jnp.tril(jnp.ones((seq, seq), dtype=bool))
    scores = jnp.where(mask, scores, -jnp.inf)
    pattern = jax.nn.softmax(scores, axis=-1)
    z = jnp.einsum("...khd,...hqk->...qhd", vh, pattern)
    out = jnp.einsum("...qhd,hdm->...qm", z, W_O) + b_O
    return out, residual


if __name__ == "__main__":
    key = jax.random.PRNGKey(0)
    ks = jax.random.split(key, 6)

    batch, seq, n_heads, d_head, d_model = 2, 8, 4, 8, 16
    hd = n_heads * d_head

    def bf16_grid(x):
        # Keep values exactly representable in bf16 so the comparison below is
        # insensitive to the platform's default f32-matmul precision mode.
        return x.astype(jnp.bfloat16).astype(jnp.float32)

    q = bf16_grid(jax.random.normal(ks[0], (batch, seq, hd), dtype=jnp.float32))
    k = bf16_grid(jax.random.normal(ks[1], (batch, seq, hd), dtype=jnp.float32))
    v = bf16_grid(jax.random.normal(ks[2], (batch, seq, hd), dtype=jnp.float32))
    residual = jax.random.normal(ks[3], (batch, seq, d_model), dtype=jnp.float32)
    W_O = bf16_grid(0.1 * jax.random.normal(ks[4], (n_heads, d_head, d_model),
                                            dtype=jnp.float32))
    b_O = bf16_grid(0.1 * jax.random.normal(ks[5], (d_model,), dtype=jnp.float32))

    out, res_out = attention_out(q, k, v, residual, W_O, b_O, n_heads=n_heads)
    jax.block_until_ready((out, res_out))

    ref_out, ref_res = _reference_attention_out(
        q, k, v, residual, W_O, b_O, n_heads=n_heads)

    assert out.shape == (batch, seq, d_model)
    assert res_out.shape == residual.shape
    # Tolerance accounts for possible differences between XLA's and Mosaic's
    # default f32 matmul precision (bf16 passes vs exact f32).
    assert jnp.allclose(out, ref_out, atol=2e-2, rtol=2e-2), \
        float(jnp.max(jnp.abs(out - ref_out)))
    assert jnp.array_equal(res_out, residual)
    print("KERNEL_OK")
</pallas_src>

<mosaic_0001>
module attributes {stable_mosaic.version = 11 : i64} {
  func.func @_attention_out_kernel(%arg0: i32, %arg1: i32, %arg2: i32, %arg3: i32, %arg4: memref<1x1x8x8xf32, #tpu.memory_space<vmem>>, %arg5: memref<1x1x8x8xf32, #tpu.memory_space<vmem>>, %arg6: memref<1x1x8x8xf32, #tpu.memory_space<vmem>>, %arg7: memref<1x8x16xf32, #tpu.memory_space<vmem>>, %arg8: memref<1x16xf32, #tpu.memory_space<vmem>>, %arg9: memref<1x8x16xf32, #tpu.memory_space<vmem>>, %arg10: memref<8x1xf32, #tpu.memory_space<vmem>>, %arg11: memref<8x1xf32, #tpu.memory_space<vmem>>, %arg12: memref<8x8xf32, #tpu.memory_space<vmem>>, %arg13: memref<8x16xf32, #tpu.memory_space<vmem>>) attributes {dimension_semantics = [#tpu.dimension_semantics<parallel>, #tpu.dimension_semantics<parallel>, #tpu.dimension_semantics<arbitrary>, #tpu.dimension_semantics<arbitrary>], iteration_bounds = array<i64: 2, 1, 4, 1>, scalar_prefetch = 0 : i64, scratch_operands = 4 : i64, tpu.core_type = #tpu.core_type<tc>, window_params = [{transform_indices = @transform_0, window_bounds = array<i64: 1, 1, 8, 8>}, {transform_indices = @transform_1, window_bounds = array<i64: 1, 1, 8, 8>}, {transform_indices = @transform_2, window_bounds = array<i64: 1, 1, 8, 8>}, {transform_indices = @transform_3, window_bounds = array<i64: 1, 8, 16>}, {pipeline_mode = #tpu.pipeline_mode<synchronous>, transform_indices = @transform_4, window_bounds = array<i64: 1, 16>}, {transform_indices = @transform_5, window_bounds = array<i64: 1, 8, 16>}]} {
    %c0_i32 = arith.constant 0 : i32
    %0 = arith.cmpi eq, %arg2, %c0_i32 : i32
    %c0_i32_0 = arith.constant 0 : i32
    %1 = arith.cmpi eq, %arg3, %c0_i32_0 : i32
    %2 = arith.andi %0, %1 : i1
    %3 = arith.extui %2 : i1 to i32
    %c0_i32_1 = arith.constant 0 : i32
    %4 = arith.cmpi ne, %3, %c0_i32_1 : i32
    scf.if %4 {
      %cst = arith.constant 0.000000e+00 : f32
      %22 = vector.broadcast %cst : f32 to vector<8x16xf32>
      %c0 = arith.constant 0 : index
      %c0_10 = arith.constant 0 : index
      %23 = vector.load %arg13[%c0, %c0_10] : memref<8x16xf32, #tpu.memory_space<vmem>>, vector<8x16xf32>
      tpu.vector_store %arg13[%c0, %c0_10], %22 {strides = array<i32>} : memref<8x16xf32, #tpu.memory_space<vmem>>, vector<8x16xf32>,
    } else {
    }
    %c0_i32_2 = arith.constant 0 : i32
    %5 = arith.cmpi eq, %arg3, %c0_i32_2 : i32
    %6 = arith.extui %5 : i1 to i32
    %c0_i32_3 = arith.constant 0 : i32
    %7 = arith.cmpi ne, %6, %c0_i32_3 : i32
    scf.if %7 {
      %cst = arith.constant 0xFF800000 : f32
      %22 = vector.broadcast %cst : f32 to vector<8x1xf32>
      %c0 = arith.constant 0 : index
      %c0_10 = arith.constant 0 : index
      %23 = vector.load %arg10[%c0, %c0_10] : memref<8x1xf32, #tpu.memory_space<vmem>>, vector<8x1xf32>
      tpu.vector_store %arg10[%c0, %c0_10], %22 {strides = array<i32>} : memref<8x1xf32, #tpu.memory_space<vmem>>, vector<8x1xf32>,
      %cst_11 = arith.constant 0.000000e+00 : f32
      %24 = vector.broadcast %cst_11 : f32 to vector<8x1xf32>
      %c0_12 = arith.constant 0 : index
      %c0_13 = arith.constant 0 : index
      %25 = vector.load %arg11[%c0_12, %c0_13] : memref<8x1xf32, #tpu.memory_space<vmem>>, vector<8x1xf32>
      tpu.vector_store %arg11[%c0_12, %c0_13], %24 {strides = array<i32>} : memref<8x1xf32, #tpu.memory_space<vmem>>, vector<8x1xf32>,
      %cst_14 = arith.constant 0.000000e+00 : f32
      %26 = vector.broadcast %cst_14 : f32 to vector<8x8xf32>
      %c0_15 = arith.constant 0 : index
      %c0_16 = arith.constant 0 : index
      %27 = vector.load %arg12[%c0_15, %c0_16] : memref<8x8xf32, #tpu.memory_space<vmem>>, vector<8x8xf32>
      tpu.vector_store %arg12[%c0_15, %c0_16], %26 {strides = array<i32>} : memref<8x8xf32, #tpu.memory_space<vmem>>, vector<8x8xf32>,
    } else {
    }
    %c8_i32 = arith.constant 8 : i32
    %8 = arith.muli %arg3, %c8_i32 : i32
    %c8_i32_4 = arith.constant 8 : i32
    %9 = arith.muli %arg1, %c8_i32_4 : i32
    %c7_i32 = arith.constant 7 : i32
    %10 = arith.addi %9, %c7_i32 : i32
    %11 = arith.cmpi sle, %8, %10 : i32
    %12 = arith.extui %11 : i1 to i32
    %c0_i32_5 = arith.constant 0 : i32
    %13 = arith.cmpi ne, %12, %c0_i32_5 : i32
    scf.if %13 {
      %c0 = arith.constant 0 : index
      %c0_10 = arith.constant 0 : index
      %c0_11 = arith.constant 0 : index
      %c0_12 = arith.constant 0 : index
      %22 = vector.load %arg4[%c0, %c0_10, %c0_11, %c0_12] : memref<1x1x8x8xf32, #tpu.memory_space<vmem>>, vector<1x1x8x8xf32>
      %23 = vector.shape_cast %22 : vector<1x1x8x8xf32> to vector<8x8xf32>
      %c0_13 = arith.constant 0 : index
      %c0_14 = arith.constant 0 : index
      %c0_15 = arith.constant 0 : index
      %c0_16 = arith.constant 0 : index
      %24 = vector.load %arg5[%c0_13, %c0_14, %c0_15, %c0_16] : memref<1x1x8x8xf32, #tpu.memory_space<vmem>>, vector<1x1x8x8xf32>
      %25 = vector.shape_cast %24 : vector<1x1x8x8xf32> to vector<8x8xf32>
      %cst = arith.constant dense<0.000000e+00> : vector<8x8xf32>
      %26 = tpu.matmul %23, %25, %cst {dimension_numbers = #tpu.dot_dimension_numbers<[1], [1], [0], [0], [0, 0, 1, 0], [], []>} : vector<8x8xf32>, vector<8x8xf32>, vector<8x8xf32> -> vector<8x8xf32>
      %cst_17 = arith.constant 0.353553385 : f32
      %27 = vector.broadcast %cst_17 : f32 to vector<8x8xf32>
      %28 = arith.mulf %26, %27 : vector<8x8xf32>
      %c8_i32_18 = arith.constant 8 : i32
      %29 = arith.muli %arg1, %c8_i32_18 : i32
      %30 = tpu.iota {dimensions = array<i32: 0>} : vector<8x8xi32>
      %31 = vector.broadcast %29 : i32 to vector<8x8xi32>
      %32 = arith.addi %31, %30 : vector<8x8xi32>
      %c8_i32_19 = arith.constant 8 : i32
      %33 = arith.muli %arg3, %c8_i32_19 : i32
      %34 = tpu.iota {dimensions = array<i32: 1>} : vector<8x8xi32>
      %35 = vector.broadcast %33 : i32 to vector<8x8xi32>
      %36 = arith.addi %35, %34 : vector<8x8xi32>
      %37 = arith.cmpi sge, %32, %36 : vector<8x8xi32>
      %cst_20 = arith.constant -1.000000e+30 : f32
      %38 = vector.broadcast %cst_20 : f32 to vector<8x8xf32>
      %39 = arith.select %37, %28, %38 : vector<8x8xi1>, vector<8x8xf32>
      %c0_21 = arith.constant 0 : index
      %c0_22 = arith.constant 0 : index
      %40 = vector.load %arg10[%c0_21, %c0_22] : memref<8x1xf32, #tpu.memory_space<vmem>>, vector<8x1xf32>
      %cst_23 = arith.constant dense<0xFF800000> : vector<8xf32>
      %41 = vector.multi_reduction <maximumf>, %39, %cst_23 [1] : vector<8x8xf32> to vector<8xf32>
      %42 = vector.shape_cast %41 : vector<8xf32> to vector<8x1xf32>
      %43 = arith.maximumf %40, %42 : vector<8x1xf32>
      %44 = arith.subf %40, %43 : vector<8x1xf32>
      %45 = math.exp %44 : vector<8x1xf32>
      %46 = vector.broadcast %43 : vector<8x1xf32> to vector<8x8xf32>
      %47 = arith.subf %39, %46 : vector<8x8xf32>
      %48 = math.exp %47 : vector<8x8xf32>
      %c0_24 = arith.constant 0 : index
      %c0_25 = arith.constant 0 : index
      %49 = vector.load %arg11[%c0_24, %c0_25] : memref<8x1xf32, #tpu.memory_space<vmem>>, vector<8x1xf32>
      %50 = arith.mulf %45, %49 : vector<8x1xf32>
      %cst_26 = arith.constant dense<0.000000e+00> : vector<8xf32>
      %51 = vector.multi_reduction <add>, %48, %cst_26 [1] : vector<8x8xf32> to vector<8xf32>
      %52 = vector.shape_cast %51 : vector<8xf32> to vector<8x1xf32>
      %53 = arith.addf %50, %52 : vector<8x1xf32>
      %c0_27 = arith.constant 0 : index
      %c0_28 = arith.constant 0 : index
      %54 = vector.load %arg11[%c0_27, %c0_28] : memref<8x1xf32, #tpu.memory_space<vmem>>, vector<8x1xf32>
      tpu.vector_store %arg11[%c0_27, %c0_28], %53 {strides = array<i32>} : memref<8x1xf32, #tpu.memory_space<vmem>>, vector<8x1xf32>,
      %c0_29 = arith.constant 0 : index
      %c0_30 = arith.constant 0 : index
      %55 = vector.load %arg12[%c0_29, %c0_30] : memref<8x8xf32, #tpu.memory_space<vmem>>, vector<8x8xf32>
      %56 = vector.broadcast %45 : vector<8x1xf32> to vector<8x8xf32>
      %57 = arith.mulf %56, %55 : vector<8x8xf32>
      %c0_31 = arith.constant 0 : index
      %c0_32 = arith.constant 0 : index
      %c0_33 = arith.constant 0 : index
      %c0_34 = arith.constant 0 : index
      %58 = vector.load %arg6[%c0_31, %c0_32, %c0_33, %c0_34] : memref<1x1x8x8xf32, #tpu.memory_space<vmem>>, vector<1x1x8x8xf32>
      %59 = vector.shape_cast %58 : vector<1x1x8x8xf32> to vector<8x8xf32>
      %cst_35 = arith.constant dense<0.000000e+00> : vector<8x8xf32>
      %60 = tpu.matmul %48, %59, %cst_35 {dimension_numbers = #tpu.dot_dimension_numbers<[1], [0], [0], [1], [0, 0, 1, 1], [], []>} : vector<8x8xf32>, vector<8x8xf32>, vector<8x8xf32> -> vector<8x8xf32>
      %61 = arith.addf %57, %60 : vector<8x8xf32>
      %c0_36 = arith.constant 0 : index
      %c0_37 = arith.constant 0 : index
      %62 = vector.load %arg12[%c0_36, %c0_37] : memref<8x8xf32, #tpu.memory_space<vmem>>, vector<8x8xf32>
      tpu.vector_store %arg12[%c0_36, %c0_37], %61 {strides = array<i32>} : memref<8x8xf32, #tpu.memory_space<vmem>>, vector<8x8xf32>,
      %c0_38 = arith.constant 0 : index
      %c0_39 = arith.constant 0 : index
      %63 = vector.load %arg10[%c0_38, %c0_39] : memref<8x1xf32, #tpu.memory_space<vmem>>, vector<8x1xf32>
      tpu.vector_store %arg10[%c0_38, %c0_39], %43 {strides = array<i32>} : memref<8x1xf32, #tpu.memory_space<vmem>>, vector<8x1xf32>,
    } else {
    }
    %c0_i32_6 = arith.constant 0 : i32
    %14 = arith.cmpi eq, %arg3, %c0_i32_6 : i32
    %15 = arith.extui %14 : i1 to i32
    %c0_i32_7 = arith.constant 0 : i32
    %16 = arith.cmpi ne, %15, %c0_i32_7 : i32
    scf.if %16 {
      %c0 = arith.constant 0 : index
      %c0_10 = arith.constant 0 : index
      %22 = vector.load %arg12[%c0, %c0_10] : memref<8x8xf32, #tpu.memory_space<vmem>>, vector<8x8xf32>
      %c0_11 = arith.constant 0 : index
      %c0_12 = arith.constant 0 : index
      %23 = vector.load %arg11[%c0_11, %c0_12] : memref<8x1xf32, #tpu.memory_space<vmem>>, vector<8x1xf32>
      %24 = vector.broadcast %23 : vector<8x1xf32> to vector<8x8xf32>
      %25 = arith.divf %22, %24 : vector<8x8xf32>
      %c0_13 = arith.constant 0 : index
      %c0_14 = arith.constant 0 : index
      %26 = vector.load %arg13[%c0_13, %c0_14] : memref<8x16xf32, #tpu.memory_space<vmem>>, vector<8x16xf32>
      %c0_15 = arith.constant 0 : index
      %c0_16 = arith.constant 0 : index
      %c0_17 = arith.constant 0 : index
      %27 = vector.load %arg7[%c0_15, %c0_16, %c0_17] : memref<1x8x16xf32, #tpu.memory_space<vmem>>, vector<1x8x16xf32>
      %28 = vector.shape_cast %27 : vector<1x8x16xf32> to vector<8x16xf32>
      %cst = arith.constant dense<0.000000e+00> : vector<8x16xf32>
      %29 = tpu.matmul %25, %28, %cst {dimension_numbers = #tpu.dot_dimension_numbers<[1], [0], [0], [1], [0, 0, 1, 1], [], []>} : vector<8x8xf32>, vector<8x16xf32>, vector<8x16xf32> -> vector<8x16xf32>
      %30 = arith.addf %26, %29 : vector<8x16xf32>
      %c0_18 = arith.constant 0 : index
      %c0_19 = arith.constant 0 : index
      %31 = vector.load %arg13[%c0_18, %c0_19] : memref<8x16xf32, #tpu.memory_space<vmem>>, vector<8x16xf32>
      tpu.vector_store %arg13[%c0_18, %c0_19], %30 {strides = array<i32>} : memref<8x16xf32, #tpu.memory_space<vmem>>, vector<8x16xf32>,
    } else {
    }
    %c3_i32 = arith.constant 3 : i32
    %17 = arith.cmpi eq, %arg2, %c3_i32 : i32
    %c0_i32_8 = arith.constant 0 : i32
    %18 = arith.cmpi eq, %arg3, %c0_i32_8 : i32
    %19 = arith.andi %17, %18 : i1
    %20 = arith.extui %19 : i1 to i32
    %c0_i32_9 = arith.constant 0 : i32
    %21 = arith.cmpi ne, %20, %c0_i32_9 : i32
    scf.if %21 {
      %c0 = arith.constant 0 : index
      %c0_10 = arith.constant 0 : index
      %22 = vector.load %arg13[%c0, %c0_10] : memref<8x16xf32, #tpu.memory_space<vmem>>, vector<8x16xf32>
      %c0_11 = arith.constant 0 : index
      %c0_12 = arith.constant 0 : index
      %23 = vector.load %arg8[%c0_11, %c0_12] : memref<1x16xf32, #tpu.memory_space<vmem>>, vector<1x16xf32>
      %24 = vector.broadcast %23 : vector<1x16xf32> to vector<8x16xf32>
      %25 = arith.addf %22, %24 : vector<8x16xf32>
      %c0_13 = arith.constant 0 : index
      %c0_14 = arith.constant 0 : index
      %c0_15 = arith.constant 0 : index
      %26 = vector.load %arg9[%c0_13, %c0_14, %c0_15] : memref<1x8x16xf32, #tpu.memory_space<vmem>>, vector<1x8x16xf32>
      %27 = vector.shape_cast %26 : vector<1x8x16xf32> to vector<8x16xf32>
      %28 = vector.shape_cast %25 : vector<8x16xf32> to vector<1x8x16xf32>
      tpu.vector_store %arg9[%c0_13, %c0_14, %c0_15], %28 {strides = array<i32>} : memref<1x8x16xf32, #tpu.memory_space<vmem>>, vector<1x8x16xf32>,
    } else {
    }
    return
  }
  func.func @transform_0(%arg0: i32, %arg1: i32, %arg2: i32, %arg3: i32) -> (i32, i32, i32, i32) {
    %c0_i32 = arith.constant 0 : i32
    %c0_i32_0 = arith.constant 0 : i32
    return %arg0, %arg2, %arg1, %c0_i32 : i32, i32, i32, i32
  }
  func.func @transform_1(%arg0: i32, %arg1: i32, %arg2: i32, %arg3: i32) -> (i32, i32, i32, i32) {
    %c0_i32 = arith.constant 0 : i32
    %c0_i32_0 = arith.constant 0 : i32
    return %arg0, %arg2, %arg3, %c0_i32 : i32, i32, i32, i32
  }
  func.func @transform_2(%arg0: i32, %arg1: i32, %arg2: i32, %arg3: i32) -> (i32, i32, i32, i32) {
    %c0_i32 = arith.constant 0 : i32
    %c0_i32_0 = arith.constant 0 : i32
    return %arg0, %arg2, %arg3, %c0_i32 : i32, i32, i32, i32
  }
  func.func @transform_3(%arg0: i32, %arg1: i32, %arg2: i32, %arg3: i32) -> (i32, i32, i32) {
    %c0_i32 = arith.constant 0 : i32
    %c0_i32_0 = arith.constant 0 : i32
    %c0_i32_1 = arith.constant 0 : i32
    return %arg2, %c0_i32, %c0_i32_0 : i32, i32, i32
  }
  func.func @transform_4(%arg0: i32, %arg1: i32, %arg2: i32, %arg3: i32) -> (i32, i32) {
    %c0_i32 = arith.constant 0 : i32
    %c0_i32_0 = arith.constant 0 : i32
    %c0_i32_1 = arith.constant 0 : i32
    return %c0_i32, %c0_i32_0 : i32, i32
  }
  func.func @transform_5(%arg0: i32, %arg1: i32, %arg2: i32, %arg3: i32) -> (i32, i32, i32) {
    %c0_i32 = arith.constant 0 : i32
    %c0_i32_0 = arith.constant 0 : i32
    return %arg0, %arg1, %c0_i32 : i32, i32, i32
  }
}

</mosaic_0001>

<llo_original>
// kernel: tpu_custom_call.1
$region0: #{tpu_custom_call.1}
  #allocation0 [shape = 'u32[]', space=smem, size = 0x4, offset = 0x4, fixed_abs, tag = 'smem constant byte address 0x4 - core index']
  #allocation1 [shape = 'u32[72,128]{1,0:T(1,128)}', space=vmem, size = 0x9000, scoped, tag = 'internal scratch']
  #allocation2 [shape = 'f32[8,1]{1,0:T(8,128)}', space=vmem, size = 0x1000, scoped, tag = 'scratch operand']
  #allocation3 [shape = 'f32[8,1]{1,0:T(8,128)}', space=vmem, size = 0x1000, scoped, tag = 'scratch operand']
  #allocation4 [shape = 'f32[8,8]{1,0:T(8,128)}', space=vmem, size = 0x1000, scoped, tag = 'scratch operand']
  #allocation5 [shape = 'f32[8,16]{1,0:T(8,128)}', space=vmem, size = 0x1000, scoped, tag = 'scratch operand']
  %s0 = inlined_call_operand.hbm [shape: f32[2,4,8,8], index: 0, kind: input, shape index: {}]
  %s1 = inlined_call_operand.hbm [shape: f32[2,4,8,8], index: 1, kind: input, shape index: {}]
  %s2 = inlined_call_operand.hbm [shape: f32[2,4,8,8], index: 2, kind: input, shape index: {}]
  %s3 = inlined_call_operand.hbm [shape: f32[4,8,16], index: 3, kind: input, shape index: {}]
  %s4 = inlined_call_operand.vmem [shape: f32[1,16], index: 4, kind: input, shape index: {}]
  %s5 = inlined_call_operand.hbm [shape: f32[2,8,16], index: 5, kind: output, shape index: {}]
  %s6 = sld [smem:[#allocation0]]
  $region89: #{tpu_custom_call.1} parent=0
    _
  %s8 = ssub.s32 1, %s6
  %s9 = scalar_select 0, %s8, %s6
  $region1: #{tpu_custom_call.1} parent=0
    #allocation6 [shape = 'u8[8192]{0}', space=vmem, size = 0x2000, scoped, tag = 'input window, operand 0']
    #allocation7 [shape = 's32[2]{0}', space=sflag, size = 0x8, scoped, tag = 'scoped memory for tpu_custom_call.1']
    #allocation8 [shape = 's32[2]{0}', space=sflag, size = 0x8, scoped, tag = 'scoped memory for tpu_custom_call.1']
    #allocation9 [shape = 'u8[8192]{0}', space=vmem, size = 0x2000, scoped, tag = 'input window, operand 1']
    #allocation10 [shape = 's32[2]{0}', space=sflag, size = 0x8, scoped, tag = 'scoped memory for tpu_custom_call.1']
    #allocation11 [shape = 'u8[8192]{0}', space=vmem, size = 0x2000, scoped, tag = 'input window, operand 2']
    #allocation12 [shape = 'u8[8192]{0}', space=vmem, size = 0x2000, scoped, tag = 'input window, operand 3']
    #allocation13 [shape = 's32[2]{0}', space=sflag, size = 0x8, scoped, tag = 'scoped memory for tpu_custom_call.1']
    #allocation14 [shape = 'u8[8192]{0}', space=vmem, size = 0x2000, scoped, tag = 'output window, operand 0']
    %10 = vsyncpa [#allocation7], 0
    %s11 = scalar_lea.sflag [#allocation7], 1
    %12 = vsyncpa %s11, 0
    %13 = vsyncpa [#allocation10], 0
    %s14 = scalar_lea.sflag [#allocation10], 1
    %15 = vsyncpa %s14, 0
    %16 = vsyncpa [#allocation13], 0
    %s17 = scalar_lea.sflag [#allocation13], 1
    %18 = vsyncpa %s17, 0
    %19 = vsyncpa [#allocation8], 0
    %s20 = scalar_lea.sflag [#allocation8], 1
    %21 = vsyncpa %s20, 0
    loop: start=0, step=1, limit=10
    $region2: #{tpu_custom_call.1} parent=1 // loop_pre_header
      _
    $region3: #{tpu_custom_call.1} parent=1 // loop_header
      %s23 = sphi 0, %s27
      %p24 = scmp.ge.s32.totalorder %s23, 10
      %s30 = sphi 0, %s56
      %s31 = sphi 0, %s52
      %s32 = sphi 0, %s48
      %s33 = sphi 0, %s44
      %s34 = sphi 0, %s30
      %s35 = sphi 0, %s31
      %s36 = sphi 0, %s32
      %s37 = sphi 0, %s33
      %s38 = sphi 0, %s34
      %s39 = sphi 0, %s35
      %s40 = sphi 0, %s36
      %s41 = sphi 0, %s37
      %s63 = sphi 0, %s65
      %s66 = sphi 0, %s63
      %s67 = sphi 0, %s66
      %s83 = sphi 0, %s67
      %s93 = sphi 0, %s95
      %s96 = sphi 0, %s93
      %s97 = sphi 0, %s96
      %s113 = sphi 0, %s97
      %s123 = sphi 0, %s125
      %s126 = sphi 0, %s123
      %s127 = sphi 0, %s126
      %s143 = sphi 0, %s127
      %s149 = sphi 0, %s151
      %s152 = sphi 0, %s149
      %s153 = sphi 0, %s152
      %s169 = sphi 0, %s153
      %s173 = sphi 0, %s173
      %s175 = sphi 0, %s173
      %s176 = sphi 0, %s175
      %s190 = sphi 0, %s176
      %s198 = sphi 0, %s200
      %s201 = sphi 0, %s198
      %s202 = sphi 0, %s201
      %s218 = sphi 0, %s202
    $region4: #{tpu_custom_call.1} parent=1 // loop_header_branch
      %26 = sbr.rel (%p24) target = $region8
    $region5: #{tpu_custom_call.1} parent=1 // loop_body
      %s28 = ssub.s32 %s23, 1
      %s29 = ssub.s32 %s23, 2
      %s42 = sadd.s32 1, %s33
      %p43 = scmp.ge.s32.totalorder %s42, 1
      %s44 = scalar_select %p43, 0, %s42
      %s45 = sadd.s32 1, %s32
      %s46 = scalar_select %p43, %s45, %s32
      %p47 = scmp.ge.s32.totalorder %s46, 4
      %s48 = scalar_select %p47, 0, %s46
      %s49 = sadd.s32 1, %s31
      %s50 = scalar_select %p47, %s49, %s31
      %p51 = scmp.ge.s32.totalorder %s50, 1
      %s52 = scalar_select %p51, 0, %s50
      %s53 = sadd.s32 1, %s30
      %s54 = scalar_select %p51, %s53, %s30
      %p55 = scmp.ge.s32.totalorder %s54, 2
      %s56 = scalar_select %p55, 0, %s54
      %s57 = ssub.s32 %s30, %s56
      %s58 = ssub.s32 %s32, %s48
      %s59 = sor.u32 %s57, %s58
      %s60 = ssub.s32 %s31, %s52
      %s61 = sor.u32 %s59, %s60
      %p62 = scmp.eq.s32.totalorder %s61, 0
      %s64 = sadd.s32 %s63, 1
      %s65 = scalar_select %p62, %s63, %s64
      %p68 = pneg %p62
      %p69 = scmp.eq.s32.totalorder %s23, 7
      %p70 = por %p68, %p69
      %p71 = scmp.ne.s32.totalorder %s63, %s66
      %p72 = scmp.eq.s32.totalorder %s23, 0
      %p73 = por %p71, %p72
      %p74 = scmp.ne.s32.totalorder %s63, %s66
      %p75 = scmp.eq.s32.totalorder %s28, 7
      %p76 = por %p74, %p75
      %p77 = scmp.ne.s32.totalorder %s66, %s67
      %p78 = scmp.eq.s32.totalorder %s28, 0
      %p79 = por %p77, %p78
      %p80 = scmp.ne.s32.totalorder %s66, %s67
      %p81 = scmp.eq.s32.totalorder %s29, 7
      %p82 = por %p80, %p81
      %p84 = scmp.ne.s32.totalorder %s67, %s83
      %p85 = scmp.eq.s32.totalorder %s29, 0
      %p86 = por %p84, %p85
      %s87 = ssub.s32 %s30, %s56
      %s88 = ssub.s32 %s32, %s48
      %s89 = sor.u32 %s87, %s88
      %s90 = ssub.s32 %s33, %s44
      %s91 = sor.u32 %s89, %s90
      %p92 = scmp.eq.s32.totalorder %s91, 0
      %s94 = sadd.s32 %s93, 1
      %s95 = scalar_select %p92, %s93, %s94
      %p98 = pneg %p92
      %p99 = scmp.eq.s32.totalorder %s23, 7
      %p100 = por %p98, %p99
      %p101 = scmp.ne.s32.totalorder %s93, %s96
      %p102 = scmp.eq.s32.totalorder %s23, 0
      %p103 = por %p101, %p102
      %p104 = scmp.ne.s32.totalorder %s93, %s96
      %p105 = scmp.eq.s32.totalorder %s28, 7
      %p106 = por %p104, %p105
      %p107 = scmp.ne.s32.totalorder %s96, %s97
      %p108 = scmp.eq.s32.totalorder %s28, 0
      %p109 = por %p107, %p108
      %p110 = scmp.ne.s32.totalorder %s96, %s97
      %p111 = scmp.eq.s32.totalorder %s29, 7
      %p112 = por %p110, %p111
      %p114 = scmp.ne.s32.totalorder %s97, %s113
      %p115 = scmp.eq.s32.totalorder %s29, 0
      %p116 = por %p114, %p115
      %s117 = ssub.s32 %s30, %s56
      %s118 = ssub.s32 %s32, %s48
      %s119 = sor.u32 %s117, %s118
      %s120 = ssub.s32 %s33, %s44
      %s121 = sor.u32 %s119, %s120
      %p122 = scmp.eq.s32.totalorder %s121, 0
      %s124 = sadd.s32 %s123, 1
      %s125 = scalar_select %p122, %s123, %s124
      %p128 = pneg %p122
      %p129 = scmp.eq.s32.totalorder %s23, 7
      %p130 = por %p128, %p129
      %p131 = scmp.ne.s32.totalorder %s123, %s126
      %p132 = scmp.eq.s32.totalorder %s23, 0
      %p133 = por %p131, %p132
      %p134 = scmp.ne.s32.totalorder %s123, %s126
      %p135 = scmp.eq.s32.totalorder %s28, 7
      %p136 = por %p134, %p135
      %p137 = scmp.ne.s32.totalorder %s126, %s127
      %p138 = scmp.eq.s32.totalorder %s28, 0
      %p139 = por %p137, %p138
      %p140 = scmp.ne.s32.totalorder %s126, %s127
      %p141 = scmp.eq.s32.totalorder %s29, 7
      %p142 = por %p140, %p141
      %p144 = scmp.ne.s32.totalorder %s127, %s143
      %p145 = scmp.eq.s32.totalorder %s29, 0
      %p146 = por %p144, %p145
      %s147 = ssub.s32 %s32, %s48
      %p148 = scmp.eq.s32.totalorder %s147, 0
      %s150 = sadd.s32 %s149, 1
      %s151 = scalar_select %p148, %s149, %s150
      %p154 = pneg %p148
      %p155 = scmp.eq.s32.totalorder %s23, 7
      %p156 = por %p154, %p155
      %p157 = scmp.ne.s32.totalorder %s149, %s152
      %p158 = scmp.eq.s32.totalorder %s23, 0
      %p159 = por %p157, %p158
      %p160 = scmp.ne.s32.totalorder %s149, %s152
      %p161 = scmp.eq.s32.totalorder %s28, 7
      %p162 = por %p160, %p161
      %p163 = scmp.ne.s32.totalorder %s152, %s153
      %p164 = scmp.eq.s32.totalorder %s28, 0
      %p165 = por %p163, %p164
      %p166 = scmp.ne.s32.totalorder %s152, %s153
      %p167 = scmp.eq.s32.totalorder %s29, 7
      %p168 = por %p166, %p167
      %p170 = scmp.ne.s32.totalorder %s153, %s169
      %p171 = scmp.eq.s32.totalorder %s29, 0
      %p172 = por %p170, %p171
      %s174 = sadd.s32 %s173, 1
      %p177 = scmp.eq.s32.totalorder %s23, 7
      %p178 = scmp.ne.s32.totalorder %s173, %s175
      %p179 = scmp.eq.s32.totalorder %s23, 0
      %p180 = por %p178, %p179
      %p181 = scmp.ne.s32.totalorder %s173, %s175
      %p182 = scmp.eq.s32.totalorder %s28, 7
      %p183 = por %p181, %p182
      %p184 = scmp.ne.s32.totalorder %s175, %s176
      %p185 = scmp.eq.s32.totalorder %s28, 0
      %p186 = por %p184, %p185
      %p187 = scmp.ne.s32.totalorder %s175, %s176
      %p188 = scmp.eq.s32.totalorder %s29, 7
      %p189 = por %p187, %p188
      %p191 = scmp.ne.s32.totalorder %s176, %s190
      %p192 = scmp.eq.s32.totalorder %s29, 0
      %p193 = por %p191, %p192
      %s194 = ssub.s32 %s30, %s56
      %s195 = ssub.s32 %s31, %s52
      %s196 = sor.u32 %s194, %s195
      %p197 = scmp.eq.s32.totalorder %s196, 0
      %s199 = sadd.s32 %s198, 1
      %s200 = scalar_select %p197, %s198, %s199
      %p203 = pneg %p197
      %p204 = scmp.eq.s32.totalorder %s23, 7
      %p205 = por %p203, %p204
      %p206 = scmp.ne.s32.totalorder %s198, %s201
      %p207 = scmp.eq.s32.totalorder %s23, 0
      %p208 = por %p206, %p207
      %p209 = scmp.ne.s32.totalorder %s198, %s201
      %p210 = scmp.eq.s32.totalorder %s28, 7
      %p211 = por %p209, %p210
      %p212 = scmp.ne.s32.totalorder %s201, %s202
      %p213 = scmp.eq.s32.totalorder %s28, 0
      %p214 = por %p212, %p213
      %p215 = scmp.ne.s32.totalorder %s201, %s202
      %p216 = scmp.eq.s32.totalorder %s29, 7
      %p217 = por %p215, %p216
      %p219 = scmp.ne.s32.totalorder %s202, %s218
      %p220 = scmp.eq.s32.totalorder %s29, 0
      %p221 = por %p219, %p220
      %p222 = scmp.le.s32.totalorder 1, %s23
      %p223 = scmp.lt.s32.totalorder %s23, 9
      %p224 = pnand %p222, %p223
      %p225 = pneg %p224
      // Predicated region
      $region9: #{tpu_custom_call.1} parent=5 // pred_check
        _
      $region10: #{tpu_custom_call.1} parent=5 // pred_check_branch
        %227 = sbr.rel (%p224) target = $region12
      $region11: #{tpu_custom_call.1} parent=5 // pred_region
        %s228 = ssub.s32 %s23, 1
        // Predicated region
        $region13: #{tpu_custom_call.1} parent=11 // pred_check
          %p229 = pneg %p186
        $region14: #{tpu_custom_call.1} parent=11 // pred_check_branch
          %231 = sbr.rel (%p229) target = $region16
        $region15: #{tpu_custom_call.1} parent=11 // pred_region
          _
        $region16: #{tpu_custom_call.1} parent=11 // pred_fallthru
          _
      $region12: #{tpu_custom_call.1} parent=5 // pred_fallthru
        _
      %p232 = scmp.lt.s32.totalorder %s23, 8
      // Predicated region
      $region17: #{tpu_custom_call.1} parent=5 // pred_check
        %p233 = pneg %p232
      $region18: #{tpu_custom_call.1} parent=5 // pred_check_branch
        %235 = sbr.rel (%p233) target = $region20
      $region19: #{tpu_custom_call.1} parent=5 // pred_region
        // Predicated region
        $region21: #{tpu_custom_call.1} parent=19 // pred_check
          %p236 = pneg %p73
        $region22: #{tpu_custom_call.1} parent=19 // pred_check_branch
          %238 = sbr.rel (%p236) target = $region24
        $region23: #{tpu_custom_call.1} parent=19 // pred_region
          %s239 = sand.u32 %s63, 1
          %s240 = scalar_lea.sflag [#allocation7], %s239
          %s241 = sand.u32 %s63, 1
          %s242 = smul.addr %s241, 8
          %s243 = scalar_lea.vmem [#allocation6], %s242
          %245 = vsyncadd %s240, 0
          %s246 = sadd.s32 %s31, %s32
          %s247 = smul.addr %s30, 4
          %s248 = sadd.s32 %s246, %s247
          %s249 = smul.addr %s248, 8
          %s250 = scalar_lea.hbm %s0, %s249
          %s252 = sshll.u32 %s250, 4
          %s253 = int_to_ptr.hbm [resolvable:$true] %s252
          %s254 = sshll.u32 %s243, 4
          %s255 = int_to_ptr.vmem [resolvable:$true] %s254
          %257 = dma.hbm_to_vmem [thread:$0]  %s253, 128, %s255, %s240
        $region24: #{tpu_custom_call.1} parent=19 // pred_fallthru
          _
        // Predicated region
        $region25: #{tpu_custom_call.1} parent=19 // pred_check
          %p258 = pneg %p103
        $region26: #{tpu_custom_call.1} parent=19 // pred_check_branch
          %260 = sbr.rel (%p258) target = $region28
        $region27: #{tpu_custom_call.1} parent=19 // pred_region
          %s261 = sand.u32 %s23, 1
          %s262 = scalar_lea.sflag [#allocation10], %s261
          %s263 = sand.u32 %s93, 1
          %s264 = smul.addr %s263, 8
          %s265 = scalar_lea.vmem [#allocation9], %s264
          %267 = vsyncadd %s262, 0
          %s268 = sadd.s32 %s33, %s32
          %s269 = smul.addr %s30, 4
          %s270 = sadd.s32 %s268, %s269
          %s271 = smul.addr %s270, 8
          %s272 = scalar_lea.hbm %s1, %s271
          %s274 = sshll.u32 %s272, 4
          %s275 = int_to_ptr.hbm [resolvable:$true] %s274
          %s276 = sshll.u32 %s265, 4
          %s277 = int_to_ptr.vmem [resolvable:$true] %s276
          %279 = dma.hbm_to_vmem [thread:$0]  %s275, 128, %s277, %s262
        $region28: #{tpu_custom_call.1} parent=19 // pred_fallthru
          _
        // Predicated region
        $region29: #{tpu_custom_call.1} parent=19 // pred_check
          %p280 = pneg %p133
        $region30: #{tpu_custom_call.1} parent=19 // pred_check_branch
          %282 = sbr.rel (%p280) target = $region32
        $region31: #{tpu_custom_call.1} parent=19 // pred_region
          %s283 = sand.u32 %s23, 1
          %s284 = scalar_lea.sflag [#allocation10], %s283
          %s285 = sand.u32 %s123, 1
          %s286 = smul.addr %s285, 8
          %s287 = scalar_lea.vmem [#allocation11], %s286
          %289 = vsyncadd %s284, 0
          %s290 = sadd.s32 %s33, %s32
          %s291 = smul.addr %s30, 4
          %s292 = sadd.s32 %s290, %s291
          %s293 = smul.addr %s292, 8
          %s294 = scalar_lea.hbm %s2, %s293
          %s296 = sshll.u32 %s294, 4
          %s297 = int_to_ptr.hbm [resolvable:$true] %s296
          %s298 = sshll.u32 %s287, 4
          %s299 = int_to_ptr.vmem [resolvable:$true] %s298
          %301 = dma.hbm_to_vmem [thread:$0]  %s297, 128, %s299, %s284
        $region32: #{tpu_custom_call.1} parent=19 // pred_fallthru
          _
        // Predicated region
        $region33: #{tpu_custom_call.1} parent=19 // pred_check
          %p302 = pneg %p159
        $region34: #{tpu_custom_call.1} parent=19 // pred_check_branch
          %304 = sbr.rel (%p302) target = $region36
        $region35: #{tpu_custom_call.1} parent=19 // pred_region
          %s305 = sand.u32 %s149, 1
          %s306 = scalar_lea.sflag [#allocation13], %s305
          %s307 = sand.u32 %s149, 1
          %s308 = smul.addr %s307, 8
          %s309 = scalar_lea.vmem [#allocation12], %s308
          %311 = vsyncadd %s306, 0
          %s312 = smul.addr %s32, 8
          %s313 = scalar_lea.hbm %s3, %s312
          %s315 = sshll.u32 %s313, 4
          %s316 = int_to_ptr.hbm [resolvable:$true] %s315
          %s317 = sshll.u32 %s309, 4
          %s318 = int_to_ptr.vmem [resolvable:$true] %s317
          %320 = dma.hbm_to_vmem [thread:$0]  %s316, 128, %s318, %s306
        $region36: #{tpu_custom_call.1} parent=19 // pred_fallthru
          _
      $region20: #{tpu_custom_call.1} parent=5 // pred_fallthru
        _
      %p321 = scmp.le.s32.totalorder 1, %s23
      %p322 = scmp.lt.s32.totalorder %s23, 9
      %p323 = pnand %p321, %p322
      %p324 = pneg %p323
      // Predicated region
      $region37: #{tpu_custom_call.1} parent=5 // pred_check
        _
      $region38: #{tpu_custom_call.1} parent=5 // pred_check_branch
        %326 = sbr.rel (%p323) target = $region40
      $region39: #{tpu_custom_call.1} parent=5 // pred_region
        %s327 = ssub.s32 %s23, 1
        %s328 = sand.u32 %s66, 1
        %s329 = scalar_lea.sflag [#allocation7], %s328
        %s330 = sand.u32 %s66, 1
        %s331 = smul.addr %s330, 8
        %s332 = scalar_lea.vmem [#allocation6], %s331
        // Predicated region
        $region41: #{tpu_custom_call.1} parent=39 // pred_check
          %p333 = pneg %p79
        $region42: #{tpu_custom_call.1} parent=39 // pred_check_branch
          %335 = sbr.rel (%p333) target = $region44
        $region43: #{tpu_custom_call.1} parent=39 // pred_region
          %337 = dma.done %s329, 128
        $region44: #{tpu_custom_call.1} parent=39 // pred_fallthru
          _
        %s338 = sand.u32 %s28, 1
        %s339 = scalar_lea.sflag [#allocation10], %s338
        %s340 = sand.u32 %s96, 1
        %s341 = smul.addr %s340, 8
        %s342 = scalar_lea.vmem [#allocation9], %s341
        // Predicated region
        $region45: #{tpu_custom_call.1} parent=39 // pred_check
          %p343 = pneg %p109
        $region46: #{tpu_custom_call.1} parent=39 // pred_check_branch
          %345 = sbr.rel (%p343) target = $region48
        $region47: #{tpu_custom_call.1} parent=39 // pred_region
          %347 = dma.done %s339, 128
        $region48: #{tpu_custom_call.1} parent=39 // pred_fallthru
          _
        %s348 = sand.u32 %s28, 1
        %s349 = scalar_lea.sflag [#allocation10], %s348
        %s350 = sand.u32 %s126, 1
        %s351 = smul.addr %s350, 8
        %s352 = scalar_lea.vmem [#allocation11], %s351
        // Predicated region
        $region49: #{tpu_custom_call.1} parent=39 // pred_check
          %p353 = pneg %p139
        $region50: #{tpu_custom_call.1} parent=39 // pred_check_branch
          %355 = sbr.rel (%p353) target = $region52
        $region51: #{tpu_custom_call.1} parent=39 // pred_region
          %357 = dma.done %s349, 128
        $region52: #{tpu_custom_call.1} parent=39 // pred_fallthru
          _
        %s358 = sand.u32 %s152, 1
        %s359 = scalar_lea.sflag [#allocation13], %s358
        %s360 = sand.u32 %s152, 1
        %s361 = smul.addr %s360, 8
        %s362 = scalar_lea.vmem [#allocation12], %s361
        // Predicated region
        $region53: #{tpu_custom_call.1} parent=39 // pred_check
          %p363 = pneg %p165
        $region54: #{tpu_custom_call.1} parent=39 // pred_check_branch
          %365 = sbr.rel (%p363) target = $region56
        $region55: #{tpu_custom_call.1} parent=39 // pred_region
          %367 = dma.done %s359, 128
        $region56: #{tpu_custom_call.1} parent=39 // pred_fallthru
          _
        %s368 = sand.u32 %s66, 1
        %s369 = scalar_lea.sflag [#allocation7], %s368
        %s370 = sand.u32 %s66, 1
        %s371 = smul.addr %s370, 8
        %s372 = scalar_lea.vmem [#allocation6], %s371
        %p373 = pneg %p79
        %p374 = pneg %p76
        %s375 = sand.u32 %s28, 1
        %s376 = scalar_lea.sflag [#allocation10], %s375
        %s377 = sand.u32 %s96, 1
        %s378 = smul.addr %s377, 8
        %s379 = scalar_lea.vmem [#allocation9], %s378
        %p380 = pneg %p109
        %p381 = pneg %p106
        %s382 = sand.u32 %s28, 1
        %s383 = scalar_lea.sflag [#allocation10], %s382
        %s384 = sand.u32 %s126, 1
        %s385 = smul.addr %s384, 8
        %s386 = scalar_lea.vmem [#allocation11], %s385
        %p387 = pneg %p139
        %p388 = pneg %p136
        %s389 = sand.u32 %s152, 1
        %s390 = scalar_lea.sflag [#allocation13], %s389
        %s391 = sand.u32 %s152, 1
        %s392 = smul.addr %s391, 8
        %s393 = scalar_lea.vmem [#allocation12], %s392
        %p394 = pneg %p165
        %p395 = pneg %p162
        %p396 = pneg %p186
        %p397 = pneg %p183
        %p398 = pneg %p214
        %p399 = pneg %p211
        %s400 = sand.u32 %s201, 1
        %s401 = scalar_lea.sflag [#allocation8], %s400
        %s402 = sand.u32 %s201, 1
        %s403 = smul.addr %s402, 8
        %s404 = scalar_lea.vmem [#allocation14], %s403
        %p405 = scmp.eq.s32.totalorder %s36, 0
        %p406 = scmp.eq.s32.totalorder %s37, 0
        %p407 = pnand %p405, %p406
        %p408 = pneg %p407
        // Predicated region
        $region57: #{tpu_custom_call.1} parent=39 // pred_check
          _
        $region58: #{tpu_custom_call.1} parent=39 // pred_check_branch
          %410 = sbr.rel (%p407) target = $region60
        $region59: #{tpu_custom_call.1} parent=39 // pred_region
          %vm411 = vcmask 130048
          %412 = vst.msk [vmem:[#allocation5] sm:$0xff] %vm411, 0.0
        $region60: #{tpu_custom_call.1} parent=39 // pred_fallthru
          _
        // Predicated region
        $region61: #{tpu_custom_call.1} parent=39 // pred_check
          %p413 = pneg %p406
        $region62: #{tpu_custom_call.1} parent=39 // pred_check_branch
          %415 = sbr.rel (%p413) target = $region64
        $region63: #{tpu_custom_call.1} parent=39 // pred_region
          %vm416 = vcmask 7168
          %417 = vst.msk [vmem:[#allocation2] sm:$0xff] %vm416, -inf
          %418 = vst.msk [vmem:[#allocation3] sm:$0xff] %vm416, 0.0
          %vm419 = vcmask 64512
          %420 = vst.msk [vmem:[#allocation4] sm:$0xff] %vm419, 0.0
        $region64: #{tpu_custom_call.1} parent=39 // pred_fallthru
          _
        %s421 = smul.u32 %s37, 8
        %s422 = smul.u32 %s35, 8
        %s423 = sadd.s32 %s422, 7
        %p424 = scmp.le.s32.totalorder %s421, %s423
        // Predicated region
        $region65: #{tpu_custom_call.1} parent=39 // pred_check
          %p425 = pneg %p424
        $region66: #{tpu_custom_call.1} parent=39 // pred_check_branch
          %427 = sbr.rel (%p425) target = $region68
        $region67: #{tpu_custom_call.1} parent=39 // pred_region
          %v428 = vld [vmem:[%s332] sm:$0xff]
          %v429 = vld [vmem:[%s342] sm:$0xff]
          %vm430 = vcmask 64512
          %v432 = vsel %vm430, %v428, 0
          %v435 = vsel %vm430, %v429, 0
          %437 = vmatpush.xpose.msra.mxu0 0.0
          %438 = vmatpush.xpose.msra.mxu0 0.0
          %439 = vmatpush.xpose.msra.mxu0 0.0
          %440 = vmatpush.xpose.msra.mxu0 0.0
          %441 = vmatpush.xpose.msra.mxu0 0.0
          %442 = vmatpush.xpose.msra.mxu0 0.0
          %443 = vmatpush.xpose.msra.mxu0 0.0
          %444 = vmatpush.xpose.msra.mxu0 0.0
          %445 = vmatpush.xpose.msra.mxu0 0.0
          %446 = vmatpush.xpose.msra.mxu0 0.0
          %447 = vmatpush.xpose.msra.mxu0 0.0
          %448 = vmatpush.xpose.msra.mxu0 0.0
          %449 = vmatpush.xpose.msra.mxu0 0.0
          %450 = vmatpush.xpose.msra.mxu0 0.0
          %451 = vmatpush.xpose.msra.mxu0 0.0
          %452 = vmatpush.xpose.msra.mxu0 %v435
          %453 = vmatmul.f32.gmra.mxu0 %v432
          %v454 = vpop.f32.mrf.mxu0
          %v455 = vadd.f32 0.0, %v454
          %456 = vdwg.mxu0
          %v457 = vmul.f32 %v455, 0.35355338
          %v458 = vlaneseq
          %v459 = vshrl.u32 %v458, 7
          %v460 = vstv %s422
          %v461 = vadd.s32 %v460, %v459
          %v462 = vlaneseq
          %v463 = vand.u32 %v462, 127
          %v464 = vstv %s421
          %v465 = vadd.s32 %v464, %v463
          %vm466 = vcmp.ge.s32.totalorder %v461, %v465
          %v467 = vsel %vm466, %v457, -1e+30
          %v468 = vld [vmem:[#allocation2] sm:$0xff]
          %v469 = vsel %vm430, %v467, -inf
          %470 = vmax.xlane.f32.xlu0 %v469
          %v471 = vpop.xlane.xlu0 %470
          %v472 = vmax.f32 %v468, %v471
          %v473 = vsub.f32 %v468, %v472
          %v474 = vmul.f32 %v473, 1.442695
          %v475 = vpow.pop %v474
          %477 = vset.pattern.permute.xlu0 0
          %478 = vperm.xlu0 %477, %v472
          %v479 = vpop.permute.xlu0 %478
          %v481 = vsub.f32 %v467, %v479
          %v482 = vmul.f32 %v481, 1.442695
          %v483 = vpow.pop %v482
          %v484 = vld [vmem:[#allocation3] sm:$0xff]
          %v485 = vmul.f32 %v475, %v484
          %v486 = vsel %vm430, %v483, 0.0
          %487 = vadd.xlane.f32.xlu0 %v486
          %v488 = vpop.xlane.xlu0 %487
          %v489 = vadd.f32 %v485, %v488
          %vm490 = vcmask 7168
          %491 = vst.msk [vmem:[#allocation3] sm:$0xff] %vm490, %v489
          %v492 = vld [vmem:[#allocation4] sm:$0xff]
          %494 = vset.pattern.permute.xlu0 0
          %495 = vperm.xlu0 %494, %v475
          %v496 = vpop.permute.xlu0 %495
          %v498 = vmul.f32 %v496, %v492
          %v499 = vld [vmem:[%s352] sm:$0xff]
          %v501 = vsel %vm430, %v483, 0
          %503 = vmatpush.msra.mxu0 0.0
          %504 = vmatpush.msra.mxu0 0.0
          %505 = vmatpush.msra.mxu0 0.0
          %506 = vmatpush.msra.mxu0 0.0
          %507 = vmatpush.msra.mxu0 0.0
          %508 = vmatpush.msra.mxu0 0.0
          %509 = vmatpush.msra.mxu0 0.0
          %510 = vmatpush.msra.mxu0 0.0
          %511 = vmatpush.msra.mxu0 0.0
          %512 = vmatpush.msra.mxu0 0.0
          %513 = vmatpush.msra.mxu0 0.0
          %514 = vmatpush.msra.mxu0 0.0
          %515 = vmatpush.msra.mxu0 0.0
          %516 = vmatpush.msra.mxu0 0.0
          %517 = vmatpush.msra.mxu0 0.0
          %518 = vmatpush.msra.mxu0 %v499
          %519 = vmatmul.f32.gmra.mxu0 %v501
          %v520 = vpop.f32.mrf.mxu0
          %v521 = vadd.f32 0.0, %v520
          %522 = vdwg.mxu0
          %v523 = vadd.f32 %v498, %v521
          %524 = vst.msk [vmem:[#allocation4] sm:$0xff] %vm430, %v523
          %525 = vst.msk [vmem:[#allocation2] sm:$0xff] %vm490, %v472
        $region68: #{tpu_custom_call.1} parent=39 // pred_fallthru
          _
        // Predicated region
        $region69: #{tpu_custom_call.1} parent=39 // pred_check
          %p526 = pneg %p406
        $region70: #{tpu_custom_call.1} parent=39 // pred_check_branch
          %528 = sbr.rel (%p526) target = $region72
        $region71: #{tpu_custom_call.1} parent=39 // pred_region
          %v529 = vld [vmem:[#allocation4] sm:$0xff]
          %v530 = vld [vmem:[#allocation3] sm:$0xff]
          %532 = vset.pattern.permute.xlu0 0
          %533 = vperm.xlu0 %532, %v530
          %v534 = vpop.permute.xlu0 %533
          %v536 = vrcp.pop %v534
          %v537 = vmul.f32 %v534, %v536
          %v538 = vsub.f32 1.0, %v537
          %v539 = vmul.f32 %v536, %v538
          %v540 = vadd.f32 %v536, %v539
          %vm541 = vweird.f32 %v534
          %vm542 = vweird.f32 %v536
          %vm543 = vmor %vm541, %vm542
          %v544 = vsel %vm543, %v536, %v540
          %v545 = vand.u32 2147483647, %v534
          %vm546 = vcmp.eq.f32.partialorder %v545, 8.507059e+37
          %v547 = vand.u32 %v534, 2147483648
          %v548 = vor.u32 1.1754944e-38, %v547
          %v549 = vsel %vm546, %v548, %v544
          %v550 = vmul.f32 %v529, %v549
          %v551 = vld [vmem:[#allocation5] sm:$0xff]
          %v552 = vld [vmem:[%s362] sm:$0xff]
          %vm553 = vcmask 64512
          %v555 = vsel %vm553, %v550, 0
          %557 = vmatpush.msra.mxu0 0.0
          %558 = vmatpush.msra.mxu0 0.0
          %559 = vmatpush.msra.mxu0 0.0
          %560 = vmatpush.msra.mxu0 0.0
          %561 = vmatpush.msra.mxu0 0.0
          %562 = vmatpush.msra.mxu0 0.0
          %563 = vmatpush.msra.mxu0 0.0
          %564 = vmatpush.msra.mxu0 0.0
          %565 = vmatpush.msra.mxu0 0.0
          %566 = vmatpush.msra.mxu0 0.0
          %567 = vmatpush.msra.mxu0 0.0
          %568 = vmatpush.msra.mxu0 0.0
          %569 = vmatpush.msra.mxu0 0.0
          %570 = vmatpush.msra.mxu0 0.0
          %571 = vmatpush.msra.mxu0 0.0
          %572 = vmatpush.msra.mxu0 %v552
          %573 = vmatmul.f32.gmra.mxu0 %v555
          %v574 = vpop.f32.mrf.mxu0
          %v575 = vadd.f32 0.0, %v574
          %576 = vdwg.mxu0
          %v577 = vadd.f32 %v551, %v575
          %vm578 = vcmask 130048
          %579 = vst.msk [vmem:[#allocation5] sm:$0xff] %vm578, %v577
        $region72: #{tpu_custom_call.1} parent=39 // pred_fallthru
          _
        %p580 = scmp.eq.s32.totalorder %s36, 3
        %p581 = pnand %p580, %p406
        %p582 = pneg %p581
        // Predicated region
        $region73: #{tpu_custom_call.1} parent=39 // pred_check
          _
        $region74: #{tpu_custom_call.1} parent=39 // pred_check_branch
          %584 = sbr.rel (%p581) target = $region76
        $region75: #{tpu_custom_call.1} parent=39 // pred_region
          %v585 = vld [vmem:[#allocation5] sm:$0xff]
          %v586 = vld [vmem:[%s4] sm:$0x1]
          %v588 = vperm.slane %v586, 0
          %v590 = vadd.f32 %v585, %v588
          %vm591 = vcmask 130048
          %592 = vst.msk [vmem:[%s404] sm:$0xff] %vm591, %v590
        $region76: #{tpu_custom_call.1} parent=39 // pred_fallthru
          _
        %s593 = sand.u32 %s201, 1
        %s594 = scalar_lea.sflag [#allocation8], %s593
        %s595 = sand.u32 %s201, 1
        %s596 = smul.addr %s595, 8
        %s597 = scalar_lea.vmem [#allocation14], %s596
        // Predicated region
        $region77: #{tpu_custom_call.1} parent=39 // pred_check
          %p598 = pneg %p211
        $region78: #{tpu_custom_call.1} parent=39 // pred_check_branch
          %600 = sbr.rel (%p598) target = $region80
        $region79: #{tpu_custom_call.1} parent=39 // pred_region
          %602 = vsyncadd %s594, 0
          %s603 = sadd.s32 %s35, %s34
          %s604 = smul.addr %s603, 8
          %s605 = scalar_lea.hbm %s5, %s604
          %s607 = sshll.u32 %s597, 4
          %s608 = int_to_ptr.vmem [resolvable:$true] %s607
          %s609 = sshll.u32 %s605, 4
          %s610 = int_to_ptr.hbm [resolvable:$true] %s609
          %612 = dma.vmem_to_hbm [thread:$0]  %s608, 128, %s610, %s594
        $region80: #{tpu_custom_call.1} parent=39 // pred_fallthru
          _
      $region40: #{tpu_custom_call.1} parent=5 // pred_fallthru
        _
      %p613 = scmp.le.s32.totalorder 2, %s23
      // Predicated region
      $region81: #{tpu_custom_call.1} parent=5 // pred_check
        %p614 = pneg %p613
      $region82: #{tpu_custom_call.1} parent=5 // pred_check_branch
        %616 = sbr.rel (%p614) target = $region84
      $region83: #{tpu_custom_call.1} parent=5 // pred_region
        %s617 = ssub.s32 %s23, 2
        // Predicated region
        $region85: #{tpu_custom_call.1} parent=83 // pred_check
          %p618 = pneg %p217
        $region86: #{tpu_custom_call.1} parent=83 // pred_check_branch
          %620 = sbr.rel (%p618) target = $region88
        $region87: #{tpu_custom_call.1} parent=83 // pred_region
          %s621 = sand.u32 %s202, 1
          %s622 = scalar_lea.sflag [#allocation8], %s621
          %s623 = sand.u32 %s202, 1
          %s624 = smul.addr %s623, 8
          %s625 = scalar_lea.vmem [#allocation14], %s624
          %627 = dma.done %s622, 128
        $region88: #{tpu_custom_call.1} parent=83 // pred_fallthru
          _
      $region84: #{tpu_custom_call.1} parent=5 // pred_fallthru
        _
    $region6: #{tpu_custom_call.1} parent=1 // loop_footer
      %s27 = sadd.s32 1, %s23
    $region7: #{tpu_custom_call.1} parent=1 // loop_footer_branch
      %22 = sbr.rel target = $region3
    $region8: #{tpu_custom_call.1} parent=1 // loop_exit
      _
    %628 = vsyncpa [#allocation7], 1
    %s629 = scalar_lea.sflag [#allocation7], 1
    %630 = vsyncpa %s629, 1
    %631 = vsyncpa [#allocation10], 1
    %s632 = scalar_lea.sflag [#allocation10], 1
    %633 = vsyncpa %s632, 1
    %634 = vsyncpa [#allocation13], 1
    %s635 = scalar_lea.sflag [#allocation13], 1
    %636 = vsyncpa %s635, 1
    %637 = vsyncpa [#allocation8], 1
    %s638 = scalar_lea.sflag [#allocation8], 1
    %639 = vsyncpa %s638, 1

</llo_original>
